<compile_context>
chip_gen: v7x
topology: tpu7x:2x2x1
jax: 0.10.0
libtpu: 0.0.40
codegen_flags: <defaults>
</compile_context>

<pallas_src>
import jax
import jax.numpy as jnp
from jax.experimental import pallas as pl
from jax.experimental.pallas import tpu as pltpu


def _tensorcores_per_chip() -> int:
    """Best-effort TensorCore count per chip (v7x = 2, earlier inference = 1)."""
    try:
        kind = jax.devices()[0].device_kind.lower()
    except Exception:
        return 1
    return 2 if "v7" in kind else 1


def _pick_class_block(n_cls, per_class_bytes, fixed_bytes, budget_bytes, num_tc):
    """Largest per-step class count whose pipeline footprint fits the budget."""
    avail = max(per_class_bytes, budget_bytes - fixed_bytes)
    cap = max(1, int(avail // per_class_bytes))
    cap = min(cap, n_cls)
    if num_tc > 1 and n_cls >= 2 * num_tc:
        # Dual-TC chips: keep >= 2*num_tc grid steps so both cores get work
        # and each core still has >= 2 steps of prefetch/compute overlap.
        cap = min(cap, int(pl.cdiv(n_cls, 2 * num_tc)))
    if cap < n_cls and cap >= 8:
        # Keep the squeezed (c_blk, D) prefix block (8,128)-legal.
        cap = (cap // 8) * 8
    return max(1, int(cap))


def _make_assemble_kernel(c_blk, prompt_len, prefix_2d, ctx_2d):
    """Kernel: write prefix / ctx / suffix into the (c_blk, S, D) output block."""

    def assemble_kernel(prefix_ref, ctx_ref, suffix_ref, out_ref):
        # prefix_ref : (c_blk, D) if prefix_2d else (c_blk, 1, D)   emb dtype
        # ctx_ref    : (P, D) if ctx_2d else (c_blk, P, D)          often fp32
        # suffix_ref : (c_blk, S-1-P, D)                            emb dtype
        # out_ref    : (c_blk, S, D)                                emb dtype
        if prefix_2d:
            out_ref[:, 0:1, :] = prefix_ref[...][:, None, :]
        else:
            out_ref[:, 0:1, :] = prefix_ref[...]
        ctx = ctx_ref[...].astype(out_ref.dtype)   # in-kernel cast (VPU, ~free)
        if ctx_2d:
            ctx = jnp.broadcast_to(ctx[None], (c_blk,) + ctx.shape)
        out_ref[:, 1:1 + prompt_len, :] = ctx
        out_ref[:, 1 + prompt_len:, :] = suffix_ref[...]

    return assemble_kernel


def coop_prompt_forward(token_prefix, prompt_tokens, token_suffix,
                        tokenized_prompts, *,
                        vmem_budget_bytes=24 * 1024 * 1024):
    """Pallas implementation of COOP_Prompt.forward (class_token_position='end').

    token_prefix      : (n_cls, 1, D)            embedding dtype (e.g. bf16)
    prompt_tokens     : (n_cls, P, D) or (P, D)  learned ctx (often fp32)
    token_suffix      : (n_cls, S-1-P, D)        embedding dtype
    tokenized_prompts : (n_cls, S) int32 — returned unchanged.
    """
    n_cls, _, D = token_prefix.shape
    dtype = token_prefix.dtype
    assert token_suffix.dtype == dtype
    assert prompt_tokens.ndim in (2, 3)

    ctx_2d = prompt_tokens.ndim == 2            # 'task_specific' unified ctx
    P = prompt_tokens.shape[-2]
    suf = token_suffix.shape[1]
    S = 1 + P + suf

    # Degenerate sizes would create zero-size block dims; fall back to XLA.
    if n_cls == 0 or P == 0 or suf == 0:
        ctx = prompt_tokens
        if ctx_2d:
            ctx = jnp.broadcast_to(ctx[None], (n_cls, P, D))
        prompts = jnp.concatenate(
            [token_prefix, ctx.astype(dtype), token_suffix], axis=1)
        return tokenized_prompts, prompts

    emb_item = jnp.dtype(dtype).itemsize
    ctx_item = jnp.dtype(prompt_tokens.dtype).itemsize

    # Double-buffered pipeline footprint: prefix + suffix inputs + output,
    # plus the ctx (per-class for class_specific, one resident tile otherwise).
    per_class = 2 * D * (1 + suf + S) * emb_item
    fixed = 0
    if ctx_2d:
        fixed = 2 * P * D * ctx_item
    else:
        per_class += 2 * P * D * ctx_item

    num_tc = _tensorcores_per_chip()
    c_blk = _pick_class_block(n_cls, per_class, fixed, vmem_budget_bytes, num_tc)
    grid = (int(pl.cdiv(n_cls, c_blk)),)

    # Squeeze the prefix's size-1 seq axis when the block stays (8,128)-legal.
    prefix_2d = (c_blk % 8 == 0) or (c_blk == n_cls)
    prefix_arg = token_prefix.reshape(n_cls, D) if prefix_2d else token_prefix

    if prefix_2d:
        prefix_spec = pl.BlockSpec((c_blk, D), lambda i: (i, 0))
    else:
        prefix_spec = pl.BlockSpec((c_blk, 1, D), lambda i: (i, 0, 0))
    if ctx_2d:
        # Constant index_map: the single (P, D) tile is fetched once and
        # re-used (VMEM-resident) for every grid step — no HBM broadcast.
        ctx_spec = pl.BlockSpec((P, D), lambda i: (0, 0))
    else:
        ctx_spec = pl.BlockSpec((c_blk, P, D), lambda i: (i, 0, 0))
    suffix_spec = pl.BlockSpec((c_blk, suf, D), lambda i: (i, 0, 0))
    out_spec = pl.BlockSpec((c_blk, S, D), lambda i: (i, 0, 0))

    ctx_read = (P * D * ctx_item) if ctx_2d else (n_cls * P * D * ctx_item)
    bytes_accessed = (n_cls * D * emb_item            # prefix read
                      + n_cls * suf * D * emb_item    # suffix read
                      + ctx_read                      # ctx read
                      + n_cls * S * D * emb_item)     # prompts write

    kernel = _make_assemble_kernel(c_blk, P, prefix_2d, ctx_2d)

    prompts = pl.pallas_call(
        kernel,
        out_shape=jax.ShapeDtypeStruct((n_cls, S, D), dtype),
        grid=grid,
        in_specs=[prefix_spec, ctx_spec, suffix_spec],
        out_specs=out_spec,
        compiler_params=pltpu.CompilerParams(
            dimension_semantics=("parallel",),
            vmem_limit_bytes=32 * 1024 * 1024),
        cost_estimate=pl.CostEstimate(
            flops=0, transcendentals=0, bytes_accessed=int(bytes_accessed)),
    )(prefix_arg, prompt_tokens, token_suffix)

    return tokenized_prompts, prompts


if __name__ == "__main__":
    # Small, deterministic setup consistent with the module (CLIP uses S=77,
    # D=512; scaled down).  prompt_len=16 is CoOp's real default, so the
    # suffix store starts at a non-packing-aligned row — correctness must not
    # depend on a hand-picked aligned P.
    n_cls = 20
    prompt_len = 16
    seq_len = 40                       # total context length S
    embed_dim = 128
    suffix_len = seq_len - 1 - prompt_len
    emb_dtype = jnp.bfloat16           # CLIP-style half-precision embeddings

    key = jax.random.PRNGKey(0)
    k_emb, k_old, k_new, k_uni, k_tok = jax.random.split(key, 5)

    # Synthetic "token_embedding(tokenized_prompts)" output -> prefix/suffix
    # buffers registered by update_new_classes().
    embedding = jax.random.normal(
        k_emb, (n_cls, seq_len, embed_dim), dtype=jnp.float32).astype(emb_dtype)
    token_prefix = embedding[:, :1, :]                  # (n_cls, 1, D)
    token_suffix = embedding[:, 1 + prompt_len:, :]     # (n_cls, suf, D)

    # Learned ctx, init ~ N(0, 0.02) (nn.init.normal_(std=0.02)), kept fp32
    # like the nn.Parameter; old ++ new concat is plain-JAX glue.
    old_ctx = 0.02 * jax.random.normal(
        k_old, (n_cls // 2, prompt_len, embed_dim), dtype=jnp.float32)
    new_ctx = 0.02 * jax.random.normal(
        k_new, (n_cls - n_cls // 2, prompt_len, embed_dim), dtype=jnp.float32)
    ctx_class_specific = jnp.concatenate([old_ctx, new_ctx], axis=0)
    ctx_task_specific = 0.02 * jax.random.normal(
        k_uni, (prompt_len, embed_dim), dtype=jnp.float32)

    tokenized_prompts = jax.random.randint(
        k_tok, (n_cls, seq_len), 0, 49408, dtype=jnp.int32)

    def check(prompts, ctx_full):
        ref = jnp.concatenate(
            [token_prefix, ctx_full.astype(emb_dtype), token_suffix], axis=1)
        assert prompts.shape == (n_cls, seq_len, embed_dim)
        assert prompts.dtype == emb_dtype
        # prefix / suffix are pure copies -> must match exactly
        assert jnp.array_equal(prompts[:, :1, :], token_prefix)
        assert jnp.array_equal(prompts[:, 1 + prompt_len:, :], token_suffix)
        # ctx goes through an fp32->bf16 cast (in-kernel vs XLA reference)
        assert jnp.allclose(prompts.astype(jnp.float32),
                            ref.astype(jnp.float32), rtol=1e-2, atol=1e-3)

    # 1) 'class_specific' ctx (per-class (P, D) tokens), default block sizing.
    tok_out, prompts = coop_prompt_forward(
        token_prefix, ctx_class_specific, token_suffix, tokenized_prompts)
    jax.block_until_ready(prompts)
    assert jnp.array_equal(tok_out, tokenized_prompts)
    check(prompts, ctx_class_specific)

    # 2) 'task_specific' (unified) ctx with a deliberately tiny VMEM budget so
    #    the grid has several steps, a ragged last block, the squeezed 2-D
    #    prefix path, and the constant index_map keeps the single (P, D) ctx
    #    tile VMEM-resident across steps.
    tok_out2, prompts2 = coop_prompt_forward(
        token_prefix, ctx_task_specific, token_suffix, tokenized_prompts,
        vmem_budget_bytes=280 * 1024)
    jax.block_until_ready(prompts2)
    assert jnp.array_equal(tok_out2, tokenized_prompts)
    check(prompts2, jnp.broadcast_to(
        ctx_task_specific[None], (n_cls, prompt_len, embed_dim)))

    print("KERNEL_OK")
</pallas_src>

<mosaic_0001>
module attributes {stable_mosaic.version = 11 : i64} {
  func.func @assemble_kernel(%arg0: i32, %arg1: memref<20x128xbf16, #tpu.memory_space<vmem>>, %arg2: memref<20x16x128xf32, #tpu.memory_space<vmem>>, %arg3: memref<20x23x128xbf16, #tpu.memory_space<vmem>>, %arg4: memref<20x40x128xbf16, #tpu.memory_space<vmem>>) attributes {dimension_semantics = [#tpu.dimension_semantics<parallel>], iteration_bounds = array<i64: 1>, scalar_prefetch = 0 : i64, scratch_operands = 0 : i64, tpu.core_type = #tpu.core_type<tc>, window_params = [{transform_indices = @transform_0, window_bounds = array<i64: 20, 128>}, {transform_indices = @transform_1, window_bounds = array<i64: 20, 16, 128>}, {transform_indices = @transform_2, window_bounds = array<i64: 20, 23, 128>}, {transform_indices = @transform_3, window_bounds = array<i64: 20, 40, 128>}]} {
    %c0 = arith.constant 0 : index
    %c0_0 = arith.constant 0 : index
    %0 = vector.load %arg1[%c0, %c0_0] : memref<20x128xbf16, #tpu.memory_space<vmem>>, vector<20x128xbf16>
    %1 = vector.shape_cast %0 : vector<20x128xbf16> to vector<20x1x128xbf16>
    %c0_1 = arith.constant 0 : index
    %c0_2 = arith.constant 0 : index
    %c0_3 = arith.constant 0 : index
    %2 = vector.load %arg4[%c0_1, %c0_2, %c0_3] : memref<20x40x128xbf16, #tpu.memory_space<vmem>>, vector<20x1x128xbf16>
    tpu.vector_store %arg4[%c0_1, %c0_2, %c0_3], %1 {strides = array<i32>} : memref<20x40x128xbf16, #tpu.memory_space<vmem>>, vector<20x1x128xbf16>,
    %c0_4 = arith.constant 0 : index
    %c0_5 = arith.constant 0 : index
    %c0_6 = arith.constant 0 : index
    %3 = vector.load %arg2[%c0_4, %c0_5, %c0_6] : memref<20x16x128xf32, #tpu.memory_space<vmem>>, vector<20x16x128xf32>
    %4 = arith.truncf %3 : vector<20x16x128xf32> to vector<20x16x128xbf16>
    %c0_7 = arith.constant 0 : index
    %c1 = arith.constant 1 : index
    %c0_8 = arith.constant 0 : index
    %5 = vector.load %arg4[%c0_7, %c1, %c0_8] : memref<20x40x128xbf16, #tpu.memory_space<vmem>>, vector<20x16x128xbf16>
    tpu.vector_store %arg4[%c0_7, %c1, %c0_8], %4 {strides = array<i32>} : memref<20x40x128xbf16, #tpu.memory_space<vmem>>, vector<20x16x128xbf16>,
    %c0_9 = arith.constant 0 : index
    %c0_10 = arith.constant 0 : index
    %c0_11 = arith.constant 0 : index
    %6 = vector.load %arg3[%c0_9, %c0_10, %c0_11] : memref<20x23x128xbf16, #tpu.memory_space<vmem>>, vector<20x23x128xbf16>
    %c0_12 = arith.constant 0 : index
    %c17 = arith.constant 17 : index
    %c0_13 = arith.constant 0 : index
    %7 = vector.load %arg4[%c0_12, %c17, %c0_13] : memref<20x40x128xbf16, #tpu.memory_space<vmem>>, vector<20x23x128xbf16>
    tpu.vector_store %arg4[%c0_12, %c17, %c0_13], %6 {strides = array<i32>} : memref<20x40x128xbf16, #tpu.memory_space<vmem>>, vector<20x23x128xbf16>,
    return
  }
  func.func @transform_0(%arg0: i32) -> (i32, i32) {
    %c0_i32 = arith.constant 0 : i32
    %c0_i32_0 = arith.constant 0 : i32
    return %arg0, %c0_i32 : i32, i32
  }
  func.func @transform_1(%arg0: i32) -> (i32, i32, i32) {
    %c0_i32 = arith.constant 0 : i32
    %c0_i32_0 = arith.constant 0 : i32
    %c0_i32_1 = arith.constant 0 : i32
    return %arg0, %c0_i32, %c0_i32_0 : i32, i32, i32
  }
  func.func @transform_2(%arg0: i32) -> (i32, i32, i32) {
    %c0_i32 = arith.constant 0 : i32
    %c0_i32_0 = arith.constant 0 : i32
    %c0_i32_1 = arith.constant 0 : i32
    return %arg0, %c0_i32, %c0_i32_0 : i32, i32, i32
  }
  func.func @transform_3(%arg0: i32) -> (i32, i32, i32) {
    %c0_i32 = arith.constant 0 : i32
    %c0_i32_0 = arith.constant 0 : i32
    %c0_i32_1 = arith.constant 0 : i32
    return %arg0, %c0_i32, %c0_i32_0 : i32, i32, i32
  }
}

</mosaic_0001>

<llo_original>
// kernel: tpu_custom_call.1
$region0: #{tpu_custom_call.1}
  #allocation0 [shape = 'u32[]', space=smem, size = 0x4, offset = 0x4, fixed_abs, tag = 'smem constant byte address 0x4 - core index']
  #allocation1 [shape = 'u32[144,128]{1,0:T(1,128)}', space=vmem, size = 0x12000, scoped, tag = 'internal scratch']
  %s0 = inlined_call_operand.hbm [shape: bf16[20,128], index: 0, kind: input, shape index: {}]
  %s1 = inlined_call_operand.hbm [shape: f32[20,16,128], index: 1, kind: input, shape index: {}]
  %s2 = inlined_call_operand.hbm [shape: bf16[20,23,128], index: 2, kind: input, shape index: {}]
  %s3 = inlined_call_operand.hbm [shape: bf16[20,40,128], index: 3, kind: output, shape index: {}]
  %s4 = sld [smem:[#allocation0]]
  $region34: #{tpu_custom_call.1} parent=0
    _
  %s6 = ssub.s32 1, %s4
  %s7 = scalar_select 0, %s6, %s4
  $region1: #{tpu_custom_call.1} parent=0
    #allocation2 [shape = 'u8[6144]{0}', space=vmem, size = 0x1800, scoped, tag = 'input window, operand 0, single buffered']
    #allocation3 [shape = 's32[1]{0}', space=sflag, size = 0x4, scoped, tag = 'scoped memory for tpu_custom_call.1']
    #allocation4 [shape = 's32[1]{0}', space=sflag, size = 0x4, scoped, tag = 'scoped memory for tpu_custom_call.1']
    #allocation5 [shape = 'u8[163840]{0}', space=vmem, size = 0x28000, scoped, tag = 'input window, operand 1, single buffered']
    #allocation6 [shape = 's32[1]{0}', space=sflag, size = 0x4, scoped, tag = 'scoped memory for tpu_custom_call.1']
    #allocation7 [shape = 'u8[122880]{0}', space=vmem, size = 0x1e000, scoped, tag = 'input window, operand 2, single buffered']
    #allocation8 [shape = 'u8[204800]{0}', space=vmem, size = 0x32000, scoped, tag = 'output window, operand 0, single buffered']
    %8 = vsyncpa [#allocation3], 0
    %9 = vsyncpa [#allocation6], 0
    %10 = vsyncpa [#allocation4], 0
    // Predicated region
    $region2: #{tpu_custom_call.1} parent=1 // pred_check
      _
    $region3: #{tpu_custom_call.1} parent=1 // pred_check_branch
      %12 = sbr.rel (0) target = $region5
    $region4: #{tpu_custom_call.1} parent=1 // pred_region
      %s14 = ssub.s32 192, 192
      %15 = vsyncadd [#allocation3], %s14
      %s16 = sshll.u32 [#allocation2], 4
      %s17 = int_to_ptr.vmem [resolvable:$true] %s16
      %22 = dma.hbm_to_vmem [thread:$0]  %s0, 192, %s17, [#allocation3], 64, 64, 4
    $region5: #{tpu_custom_call.1} parent=1 // pred_fallthru
      _
    // Predicated region
    $region6: #{tpu_custom_call.1} parent=1 // pred_check
      _
    $region7: #{tpu_custom_call.1} parent=1 // pred_check_branch
      %24 = sbr.rel (0) target = $region9
    $region8: #{tpu_custom_call.1} parent=1 // pred_region
      %s26 = ssub.s32 5120, 5120
      %27 = vsyncadd [#allocation6], %s26
      %s28 = sshll.u32 [#allocation5], 4
      %s29 = int_to_ptr.vmem [resolvable:$true] %s28
      %34 = dma.hbm_to_vmem [thread:$0]  %s1, 5120, %s29, [#allocation6], 128, 128, 8
    $region9: #{tpu_custom_call.1} parent=1 // pred_fallthru
      _
    // Predicated region
    $region10: #{tpu_custom_call.1} parent=1 // pred_check
      _
    $region11: #{tpu_custom_call.1} parent=1 // pred_check_branch
      %36 = sbr.rel (0) target = $region13
    $region12: #{tpu_custom_call.1} parent=1 // pred_region
      %s38 = ssub.s32 3840, 3840
      %39 = vsyncadd [#allocation6], %s38
      %s40 = sshll.u32 [#allocation7], 4
      %s41 = int_to_ptr.vmem [resolvable:$true] %s40
      %46 = dma.hbm_to_vmem [thread:$0]  %s2, 3840, %s41, [#allocation6], 64, 64, 4
    $region13: #{tpu_custom_call.1} parent=1 // pred_fallthru
      _
    // Predicated region
    $region14: #{tpu_custom_call.1} parent=1 // pred_check
      _
    $region15: #{tpu_custom_call.1} parent=1 // pred_check_branch
      %48 = sbr.rel (0) target = $region17
    $region16: #{tpu_custom_call.1} parent=1 // pred_region
      %49 = dma.done [#allocation3], 192
    $region17: #{tpu_custom_call.1} parent=1 // pred_fallthru
      _
    // Predicated region
    $region18: #{tpu_custom_call.1} parent=1 // pred_check
      _
    $region19: #{tpu_custom_call.1} parent=1 // pred_check_branch
      %51 = sbr.rel (0) target = $region21
    $region20: #{tpu_custom_call.1} parent=1 // pred_region
      %52 = dma.done [#allocation6], 5120
    $region21: #{tpu_custom_call.1} parent=1 // pred_fallthru
      _
    // Predicated region
    $region22: #{tpu_custom_call.1} parent=1 // pred_check
      _
    $region23: #{tpu_custom_call.1} parent=1 // pred_check_branch
      %54 = sbr.rel (0) target = $region25
    $region24: #{tpu_custom_call.1} parent=1 // pred_region
      %55 = dma.done [#allocation6], 3840
    $region25: #{tpu_custom_call.1} parent=1 // pred_fallthru
      _
    %v56 = vld [vmem:[#allocation2] sm:$0xf]
    %v57 = vld [vmem:[#allocation2 + $0x4] sm:$0xf]
    %v58 = vld [vmem:[#allocation2 + $0x8] sm:$0x3]
    %v63 = vunpack.c.l.s4 1966171168
    %v64 = vunpack.c.0.s8 %v63
    %v65 = vlaneseq
    %v66 = vshrl.u32 %v65, 7
    %v67 = vsub.s32 %v64, %v66
    %v68 = vrot.slane %v56, %v67
    %v69 = vcombine.high %v68, %v68
    %v71 = vunpack.c.l.s4 1966171168
    %v72 = vunpack.c.0.s8 %v71
    %v73 = vlaneseq
    %v74 = vshrl.u32 %v73, 7
    %v75 = vsub.s32 %v72, %v74
    %v76 = vrot.slane %v68, %v75
    %v78 = vunpack.c.l.s4 1966171168
    %v79 = vunpack.c.0.s8 %v78
    %v80 = vlaneseq
    %v81 = vshrl.u32 %v80, 7
    %v82 = vsub.s32 %v79, %v81
    %v83 = vrot.slane %v69, %v82
    %v84 = vcombine.high %v76, %v76
    %v85 = vcombine.high %v83, %v83
    %v87 = vunpack.c.l.s4 1966171168
    %v88 = vunpack.c.0.s8 %v87
    %v89 = vlaneseq
    %v90 = vshrl.u32 %v89, 7
    %v91 = vsub.s32 %v88, %v90
    %v92 = vrot.slane %v57, %v91
    %v93 = vcombine.high %v92, %v92
    %v95 = vunpack.c.l.s4 1966171168
    %v96 = vunpack.c.0.s8 %v95
    %v97 = vlaneseq
    %v98 = vshrl.u32 %v97, 7
    %v99 = vsub.s32 %v96, %v98
    %v100 = vrot.slane %v92, %v99
    %v102 = vunpack.c.l.s4 1966171168
    %v103 = vunpack.c.0.s8 %v102
    %v104 = vlaneseq
    %v105 = vshrl.u32 %v104, 7
    %v106 = vsub.s32 %v103, %v105
    %v107 = vrot.slane %v93, %v106
    %v108 = vcombine.high %v100, %v100
    %v109 = vcombine.high %v107, %v107
    %v111 = vunpack.c.l.s4 1966171168
    %v112 = vunpack.c.0.s8 %v111
    %v113 = vlaneseq
    %v114 = vshrl.u32 %v113, 7
    %v115 = vsub.s32 %v112, %v114
    %v116 = vrot.slane %v58, %v115
    %v117 = vcombine.high %v116, %v116
    %v119 = vunpack.c.l.s4 1966171168
    %v120 = vunpack.c.0.s8 %v119
    %v121 = vlaneseq
    %v122 = vshrl.u32 %v121, 7
    %v123 = vsub.s32 %v120, %v122
    %v124 = vrot.slane %v116, %v123
    %v126 = vunpack.c.l.s4 1966171168
    %v127 = vunpack.c.0.s8 %v126
    %v128 = vlaneseq
    %v129 = vshrl.u32 %v128, 7
    %v130 = vsub.s32 %v127, %v129
    %v131 = vrot.slane %v117, %v130
    %v132 = vunpack.i.l.s16 %v76
    %v133 = vunpack.i.h.s16 %v76
    %v134 = vunpack.i.l.s16 %v83
    %v135 = vunpack.i.h.s16 %v83
    %v136 = vunpack.i.l.s16 %v84
    %v137 = vunpack.i.h.s16 %v84
    %v138 = vunpack.i.l.s16 %v85
    %v139 = vunpack.i.h.s16 %v85
    %v140 = vunpack.i.l.s16 %v100
    %v141 = vunpack.i.h.s16 %v100
    %v142 = vunpack.i.l.s16 %v107
    %v143 = vunpack.i.h.s16 %v107
    %v144 = vunpack.i.l.s16 %v108
    %v145 = vunpack.i.h.s16 %v108
    %v146 = vunpack.i.l.s16 %v109
    %v147 = vunpack.i.h.s16 %v109
    %v148 = vunpack.i.l.s16 %v124
    %v149 = vunpack.i.h.s16 %v124
    %v150 = vunpack.i.l.s16 %v131
    %v151 = vunpack.i.h.s16 %v131
    %v152 = vpack.i.b16 %v132, %v132
    %v153 = vpack.i.b16 %v133, %v133
    %v154 = vpack.i.b16 %v134, %v134
    %v155 = vpack.i.b16 %v135, %v135
    %v156 = vpack.i.b16 %v136, %v136
    %v157 = vpack.i.b16 %v137, %v137
    %v158 = vpack.i.b16 %v138, %v138
    %v159 = vpack.i.b16 %v139, %v139
    %v160 = vpack.i.b16 %v140, %v140
    %v161 = vpack.i.b16 %v141, %v141
    %v162 = vpack.i.b16 %v142, %v142
    %v163 = vpack.i.b16 %v143, %v143
    %v164 = vpack.i.b16 %v144, %v144
    %v165 = vpack.i.b16 %v145, %v145
    %v166 = vpack.i.b16 %v146, %v146
    %v167 = vpack.i.b16 %v147, %v147
    %v168 = vpack.i.b16 %v148, %v148
    %v169 = vpack.i.b16 %v149, %v149
    %v170 = vpack.i.b16 %v150, %v150
    %v171 = vpack.i.b16 %v151, %v151
    %v173 = vunpack.c.l.s4 286326784
    %v174 = vunpack.c.0.s8 %v173
    %v175 = vlaneseq
    %v176 = vshrl.u32 %v175, 7
    %v177 = vsub.s32 %v174, %v176
    %v178 = vrot.slane %v152, %v177
    %v180 = vunpack.c.l.s4 286326784
    %v181 = vunpack.c.0.s8 %v180
    %v182 = vlaneseq
    %v183 = vshrl.u32 %v182, 7
    %v184 = vsub.s32 %v181, %v183
    %v185 = vrot.slane %v153, %v184
    %v187 = vunpack.c.l.s4 286326784
    %v188 = vunpack.c.0.s8 %v187
    %v189 = vlaneseq
    %v190 = vshrl.u32 %v189, 7
    %v191 = vsub.s32 %v188, %v190
    %v192 = vrot.slane %v154, %v191
    %v194 = vunpack.c.l.s4 286326784
    %v195 = vunpack.c.0.s8 %v194
    %v196 = vlaneseq
    %v197 = vshrl.u32 %v196, 7
    %v198 = vsub.s32 %v195, %v197
    %v199 = vrot.slane %v155, %v198
    %v201 = vunpack.c.l.s4 286326784
    %v202 = vunpack.c.0.s8 %v201
    %v203 = vlaneseq
    %v204 = vshrl.u32 %v203, 7
    %v205 = vsub.s32 %v202, %v204
    %v206 = vrot.slane %v156, %v205
    %v208 = vunpack.c.l.s4 286326784
    %v209 = vunpack.c.0.s8 %v208
    %v210 = vlaneseq
    %v211 = vshrl.u32 %v210, 7
    %v212 = vsub.s32 %v209, %v211
    %v213 = vrot.slane %v157, %v212
    %v215 = vunpack.c.l.s4 286326784
    %v216 = vunpack.c.0.s8 %v215
    %v217 = vlaneseq
    %v218 = vshrl.u32 %v217, 7
    %v219 = vsub.s32 %v216, %v218
    %v220 = vrot.slane %v158, %v219
    %v222 = vunpack.c.l.s4 286326784
    %v223 = vunpack.c.0.s8 %v222
    %v224 = vlaneseq
    %v225 = vshrl.u32 %v224, 7
    %v226 = vsub.s32 %v223, %v225
    %v227 = vrot.slane %v159, %v226
    %v229 = vunpack.c.l.s4 286326784
    %v230 = vunpack.c.0.s8 %v229
    %v231 = vlaneseq
    %v232 = vshrl.u32 %v231, 7
    %v233 = vsub.s32 %v230, %v232
    %v234 = vrot.slane %v160, %v233
    %v236 = vunpack.c.l.s4 286326784
    %v237 = vunpack.c.0.s8 %v236
    %v238 = vlaneseq
    %v239 = vshrl.u32 %v238, 7
    %v240 = vsub.s32 %v237, %v239
    %v241 = vrot.slane %v161, %v240
    %v243 = vunpack.c.l.s4 286326784
    %v244 = vunpack.c.0.s8 %v243
    %v245 = vlaneseq
    %v246 = vshrl.u32 %v245, 7
    %v247 = vsub.s32 %v244, %v246
    %v248 = vrot.slane %v162, %v247
    %v250 = vunpack.c.l.s4 286326784
    %v251 = vunpack.c.0.s8 %v250
    %v252 = vlaneseq
    %v253 = vshrl.u32 %v252, 7
    %v254 = vsub.s32 %v251, %v253
    %v255 = vrot.slane %v163, %v254
    %v257 = vunpack.c.l.s4 286326784
    %v258 = vunpack.c.0.s8 %v257
    %v259 = vlaneseq
    %v260 = vshrl.u32 %v259, 7
    %v261 = vsub.s32 %v258, %v260
    %v262 = vrot.slane %v164, %v261
    %v264 = vunpack.c.l.s4 286326784
    %v265 = vunpack.c.0.s8 %v264
    %v266 = vlaneseq
    %v267 = vshrl.u32 %v266, 7
    %v268 = vsub.s32 %v265, %v267
    %v269 = vrot.slane %v165, %v268
    %v271 = vunpack.c.l.s4 286326784
    %v272 = vunpack.c.0.s8 %v271
    %v273 = vlaneseq
    %v274 = vshrl.u32 %v273, 7
    %v275 = vsub.s32 %v272, %v274
    %v276 = vrot.slane %v166, %v275
    %v278 = vunpack.c.l.s4 286326784
    %v279 = vunpack.c.0.s8 %v278
    %v280 = vlaneseq
    %v281 = vshrl.u32 %v280, 7
    %v282 = vsub.s32 %v279, %v281
    %v283 = vrot.slane %v167, %v282
    %v285 = vunpack.c.l.s4 286326784
    %v286 = vunpack.c.0.s8 %v285
    %v287 = vlaneseq
    %v288 = vshrl.u32 %v287, 7
    %v289 = vsub.s32 %v286, %v288
    %v290 = vrot.slane %v168, %v289
    %v292 = vunpack.c.l.s4 286326784
    %v293 = vunpack.c.0.s8 %v292
    %v294 = vlaneseq
    %v295 = vshrl.u32 %v294, 7
    %v296 = vsub.s32 %v293, %v295
    %v297 = vrot.slane %v169, %v296
    %v299 = vunpack.c.l.s4 286326784
    %v300 = vunpack.c.0.s8 %v299
    %v301 = vlaneseq
    %v302 = vshrl.u32 %v301, 7
    %v303 = vsub.s32 %v300, %v302
    %v304 = vrot.slane %v170, %v303
    %v306 = vunpack.c.l.s4 286326784
    %v307 = vunpack.c.0.s8 %v306
    %v308 = vlaneseq
    %v309 = vshrl.u32 %v308, 7
    %v310 = vsub.s32 %v307, %v309
    %v311 = vrot.slane %v171, %v310
    %vm332 = vcmask 1040384
    %vm333 = vsmask.f32 256
    %vm334 = vmand %vm332, %vm333
    %v335 = vld [vmem:[#allocation8] sm:$0x1]
    %v336 = vsel %vm334, %v178, %v335
    %337 = vst [vmem:[#allocation8] sm:$0x1] %v336
    %v338 = vld [vmem:[#allocation8 + $0x14] sm:$0x1]
    %v339 = vsel %vm334, %v185, %v338
    %340 = vst [vmem:[#allocation8 + $0x14] sm:$0x1] %v339
    %v341 = vld [vmem:[#allocation8 + $0x28] sm:$0x1]
    %v342 = vsel %vm334, %v192, %v341
    %343 = vst [vmem:[#allocation8 + $0x28] sm:$0x1] %v342
    %v344 = vld [vmem:[#allocation8 + $0x3c] sm:$0x1]
    %v345 = vsel %vm334, %v199, %v344
    %346 = vst [vmem:[#allocation8 + $0x3c] sm:$0x1] %v345
    %v347 = vld [vmem:[#allocation8 + $0x50] sm:$0x1]
    %v348 = vsel %vm334, %v206, %v347
    %349 = vst [vmem:[#allocation8 + $0x50] sm:$0x1] %v348
    %v350 = vld [vmem:[#allocation8 + $0x64] sm:$0x1]
    %v351 = vsel %vm334, %v213, %v350
    %352 = vst [vmem:[#allocation8 + $0x64] sm:$0x1] %v351
    %v353 = vld [vmem:[#allocation8 + $0x78] sm:$0x1]
    %v354 = vsel %vm334, %v220, %v353
    %355 = vst [vmem:[#allocation8 + $0x78] sm:$0x1] %v354
    %v356 = vld [vmem:[#allocation8 + $0x8c] sm:$0x1]
    %v357 = vsel %vm334, %v227, %v356
    %358 = vst [vmem:[#allocation8 + $0x8c] sm:$0x1] %v357
    %v359 = vld [vmem:[#allocation8 + $0xa0] sm:$0x1]
    %v360 = vsel %vm334, %v234, %v359
    %361 = vst [vmem:[#allocation8 + $0xa0] sm:$0x1] %v360
    %v362 = vld [vmem:[#allocation8 + $0xb4] sm:$0x1]
    %v363 = vsel %vm334, %v241, %v362
    %364 = vst [vmem:[#allocation8 + $0xb4] sm:$0x1] %v363
    %v365 = vld [vmem:[#allocation8 + $0xc8] sm:$0x1]
    %v366 = vsel %vm334, %v248, %v365
    %367 = vst [vmem:[#allocation8 + $0xc8] sm:$0x1] %v366
    %v368 = vld [vmem:[#allocation8 + $0xdc] sm:$0x1]
    %v369 = vsel %vm334, %v255, %v368
    %370 = vst [vmem:[#allocation8 + $0xdc] sm:$0x1] %v369
    %v371 = vld [vmem:[#allocation8 + $0xf0] sm:$0x1]
    %v372 = vsel %vm334, %v262, %v371
    %373 = vst [vmem:[#allocation8 + $0xf0] sm:$0x1] %v372
    %v374 = vld [vmem:[#allocation8 + $0x104] sm:$0x1]
    %v375 = vsel %vm334, %v269, %v374
    %376 = vst [vmem:[#allocation8 + $0x104] sm:$0x1] %v375
    %v377 = vld [vmem:[#allocation8 + $0x118] sm:$0x1]
    %v378 = vsel %vm334, %v276, %v377
    %379 = vst [vmem:[#allocation8 + $0x118] sm:$0x1] %v378
    %v380 = vld [vmem:[#allocation8 + $0x12c] sm:$0x1]
    %v381 = vsel %vm334, %v283, %v380
    %382 = vst [vmem:[#allocation8 + $0x12c] sm:$0x1] %v381
    %v383 = vld [vmem:[#allocation8 + $0x140] sm:$0x1]
    %v384 = vsel %vm334, %v290, %v383
    %385 = vst [vmem:[#allocation8 + $0x140] sm:$0x1] %v384
    %v386 = vld [vmem:[#allocation8 + $0x154] sm:$0x1]
    %v387 = vsel %vm334, %v297, %v386
    %388 = vst [vmem:[#allocation8 + $0x154] sm:$0x1] %v387
    %v389 = vld [vmem:[#allocation8 + $0x168] sm:$0x1]
    %v390 = vsel %vm334, %v304, %v389
    %391 = vst [vmem:[#allocation8 + $0x168] sm:$0x1] %v390
    %v392 = vld [vmem:[#allocation8 + $0x17c] sm:$0x1]
    %v393 = vsel %vm334, %v311, %v392
    %394 = vst [vmem:[#allocation8 + $0x17c] sm:$0x1] %v393
    %v395 = vld [vmem:[#allocation5] sm:$0xff]
    %v396 = vld [vmem:[#allocation5 + $0x8] sm:$0xff]
    %v397 = vld [vmem:[#allocation5 + $0x10] sm:$0xff]
    %v398 = vld [vmem:[#allocation5 + $0x18] sm:$0xff]
    %v399 = vld [vmem:[#allocation5 + $0x20] sm:$0xff]
    %v400 = vld [vmem:[#allocation5 + $0x28] sm:$0xff]
    %v401 = vld [vmem:[#allocation5 + $0x30] sm:$0xff]
    %v402 = vld [vmem:[#allocation5 + $0x38] sm:$0xff]
    %v403 = vld [vmem:[#allocation5 + $0x40] sm:$0xff]
    %v404 = vld [vmem:[#allocation5 + $0x48] sm:$0xff]
    %v405 = vld [vmem:[#allocation5 + $0x50] sm:$0xff]
    %v406 = vld [vmem:[#allocation5 + $0x58] sm:$0xff]
    %v407 = vld [vmem:[#allocation5 + $0x60] sm:$0xff]
    %v408 = vld [vmem:[#allocation5 + $0x68] sm:$0xff]
    %v409 = vld [vmem:[#allocation5 + $0x70] sm:$0xff]
    %v410 = vld [vmem:[#allocation5 + $0x78] sm:$0xff]
    %v411 = vld [vmem:[#allocation5 + $0x80] sm:$0xff]
    %v412 = vld [vmem:[#allocation5 + $0x88] sm:$0xff]
    %v413 = vld [vmem:[#allocation5 + $0x90] sm:$0xff]
    %v414 = vld [vmem:[#allocation5 + $0x98] sm:$0xff]
    %v415 = vld [vmem:[#allocation5 + $0xa0] sm:$0xff]
    %v416 = vld [vmem:[#allocation5 + $0xa8] sm:$0xff]
    %v417 = vld [vmem:[#allocation5 + $0xb0] sm:$0xff]
    %v418 = vld [vmem:[#allocation5 + $0xb8] sm:$0xff]
    %v419 = vld [vmem:[#allocation5 + $0xc0] sm:$0xff]
    %v420 = vld [vmem:[#allocation5 + $0xc8] sm:$0xff]
    %v421 = vld [vmem:[#allocation5 + $0xd0] sm:$0xff]
    %v422 = vld [vmem:[#allocation5 + $0xd8] sm:$0xff]
    %v423 = vld [vmem:[#allocation5 + $0xe0] sm:$0xff]
    %v424 = vld [vmem:[#allocation5 + $0xe8] sm:$0xff]
    %v425 = vld [vmem:[#allocation5 + $0xf0] sm:$0xff]
    %v426 = vld [vmem:[#allocation5 + $0xf8] sm:$0xff]
    %v427 = vld [vmem:[#allocation5 + $0x100] sm:$0xff]
    %v428 = vld [vmem:[#allocation5 + $0x108] sm:$0xff]
    %v429 = vld [vmem:[#allocation5 + $0x110] sm:$0xff]
    %v430 = vld [vmem:[#allocation5 + $0x118] sm:$0xff]
    %v431 = vld [vmem:[#allocation5 + $0x120] sm:$0xff]
    %v432 = vld [vmem:[#allocation5 + $0x128] sm:$0xff]
    %v433 = vld [vmem:[#allocation5 + $0x130] sm:$0xff]
    %v434 = vld [vmem:[#allocation5 + $0x138] sm:$0xff]
    %v435 = vpack.c.bf16 %v396, %v395
    %v436 = vpack.c.bf16 %v398, %v397
    %v437 = vpack.c.bf16 %v400, %v399
    %v438 = vpack.c.bf16 %v402, %v401
    %v439 = vpack.c.bf16 %v404, %v403
    %v440 = vpack.c.bf16 %v406, %v405
    %v441 = vpack.c.bf16 %v408, %v407
    %v442 = vpack.c.bf16 %v410, %v409
    %v443 = vpack.c.bf16 %v412, %v411
    %v444 = vpack.c.bf16 %v414, %v413
    %v445 = vpack.c.bf16 %v416, %v415
    %v446 = vpack.c.bf16 %v418, %v417
    %v447 = vpack.c.bf16 %v420, %v419
    %v448 = vpack.c.bf16 %v422, %v421
    %v449 = vpack.c.bf16 %v424, %v423
    %v450 = vpack.c.bf16 %v426, %v425
    %v451 = vpack.c.bf16 %v428, %v427
    %v452 = vpack.c.bf16 %v430, %v429
    %v453 = vpack.c.bf16 %v432, %v431
    %v454 = vpack.c.bf16 %v434, %v433
    %v475 = vunpack.c.l.b16 %v435
    %v476 = vunpack.c.h.b16 %v435
    %v477 = vunpack.c.l.b16 %v436
    %v478 = vunpack.c.h.b16 %v436
    %v479 = vunpack.c.l.b16 %v437
    %v480 = vunpack.c.h.b16 %v437
    %v481 = vunpack.c.l.b16 %v438
    %v482 = vunpack.c.h.b16 %v438
    %v483 = vunpack.c.l.b16 %v439
    %v484 = vunpack.c.h.b16 %v439
    %v485 = vunpack.c.l.b16 %v440
    %v486 = vunpack.c.h.b16 %v440
    %v487 = vunpack.c.l.b16 %v441
    %v488 = vunpack.c.h.b16 %v441
    %v489 = vunpack.c.l.b16 %v442
    %v490 = vunpack.c.h.b16 %v442
    %v491 = vunpack.c.l.b16 %v443
    %v492 = vunpack.c.h.b16 %v443
    %v493 = vunpack.c.l.b16 %v444
    %v494 = vunpack.c.h.b16 %v444
    %v495 = vunpack.c.l.b16 %v445
    %v496 = vunpack.c.h.b16 %v445
    %v497 = vunpack.c.l.b16 %v446
    %v498 = vunpack.c.h.b16 %v446
    %v499 = vunpack.c.l.b16 %v447
    %v500 = vunpack.c.h.b16 %v447
    %v501 = vunpack.c.l.b16 %v448
    %v502 = vunpack.c.h.b16 %v448
    %v503 = vunpack.c.l.b16 %v449
    %v504 = vunpack.c.h.b16 %v449
    %v505 = vunpack.c.l.b16 %v450
    %v506 = vunpack.c.h.b16 %v450
    %v507 = vunpack.c.l.b16 %v451
    %v508 = vunpack.c.h.b16 %v451
    %v509 = vunpack.c.l.b16 %v452
    %v510 = vunpack.c.h.b16 %v452
    %v511 = vunpack.c.l.b16 %v453
    %v512 = vunpack.c.h.b16 %v453
    %v513 = vunpack.c.l.b16 %v454
    %v514 = vunpack.c.h.b16 %v454
    %v515 = vpack.c.b16 %v475, %v475
    %v516 = vpack.c.b16 %v476, %v476
    %v517 = vpack.c.b16 %v477, %v477
    %v518 = vpack.c.b16 %v478, %v478
    %v519 = vpack.c.b16 %v479, %v479
    %v520 = vpack.c.b16 %v480, %v480
    %v521 = vpack.c.b16 %v481, %v481
    %v522 = vpack.c.b16 %v482, %v482
    %v523 = vpack.c.b16 %v483, %v483
    %v524 = vpack.c.b16 %v484, %v484
    %v525 = vpack.c.b16 %v485, %v485
    %v526 = vpack.c.b16 %v486, %v486
    %v527 = vpack.c.b16 %v487, %v487
    %v528 = vpack.c.b16 %v488, %v488
    %v529 = vpack.c.b16 %v489, %v489
    %v530 = vpack.c.b16 %v490, %v490
    %v531 = vpack.c.b16 %v491, %v491
    %v532 = vpack.c.b16 %v492, %v492
    %v533 = vpack.c.b16 %v493, %v493
    %v534 = vpack.c.b16 %v494, %v494
    %v535 = vpack.c.b16 %v495, %v495
    %v536 = vpack.c.b16 %v496, %v496
    %v537 = vpack.c.b16 %v497, %v497
    %v538 = vpack.c.b16 %v498, %v498
    %v539 = vpack.c.b16 %v499, %v499
    %v540 = vpack.c.b16 %v500, %v500
    %v541 = vpack.c.b16 %v501, %v501
    %v542 = vpack.c.b16 %v502, %v502
    %v543 = vpack.c.b16 %v503, %v503
    %v544 = vpack.c.b16 %v504, %v504
    %v545 = vpack.c.b16 %v505, %v505
    %v546 = vpack.c.b16 %v506, %v506
    %v547 = vpack.c.b16 %v507, %v507
    %v548 = vpack.c.b16 %v508, %v508
    %v549 = vpack.c.b16 %v509, %v509
    %v550 = vpack.c.b16 %v510, %v510
    %v551 = vpack.c.b16 %v511, %v511
    %v552 = vpack.c.b16 %v512, %v512
    %v553 = vpack.c.b16 %v513, %v513
    %v554 = vpack.c.b16 %v514, %v514
    %vm555 = vsmask.f32 4368
    %vm556 = vmor %vm333, %vm555
    %v558 = vshrl.u32 %v515, 16
    %v560 = vrot.slane %v558, 7
    %v561 = vshll.u32 %v515, 16
    %v563 = vor.u32 %v560, %v561
    %v564 = vrot.slane %v560, 4
    %v566 = vshrl.u32 %v516, 16
    %v568 = vrot.slane %v566, 7
    %v569 = vshll.u32 %v516, 16
    %v571 = vor.u32 %v568, %v569
    %v572 = vsel %vm556, %v564, %v571
    %v573 = vrot.slane %v568, 4
    %v575 = vshrl.u32 %v517, 16
    %v577 = vrot.slane %v575, 7
    %v578 = vshll.u32 %v517, 16
    %v580 = vor.u32 %v577, %v578
    %v581 = vrot.slane %v577, 4
    %v583 = vshrl.u32 %v518, 16
    %v585 = vrot.slane %v583, 7
    %v586 = vshll.u32 %v518, 16
    %v588 = vor.u32 %v585, %v586
    %v589 = vsel %vm556, %v581, %v588
    %v590 = vrot.slane %v585, 4
    %v592 = vshrl.u32 %v519, 16
    %v594 = vrot.slane %v592, 7
    %v595 = vshll.u32 %v519, 16
    %v597 = vor.u32 %v594, %v595
    %v598 = vrot.slane %v594, 4
    %v600 = vshrl.u32 %v520, 16
    %v602 = vrot.slane %v600, 7
    %v603 = vshll.u32 %v520, 16
    %v605 = vor.u32 %v602, %v603
    %v606 = vsel %vm556, %v598, %v605
    %v607 = vrot.slane %v602, 4
    %v609 = vshrl.u32 %v521, 16
    %v611 = vrot.slane %v609, 7
    %v612 = vshll.u32 %v521, 16
    %v614 = vor.u32 %v611, %v612
    %v615 = vrot.slane %v611, 4
    %v617 = vshrl.u32 %v522, 16
    %v619 = vrot.slane %v617, 7
    %v620 = vshll.u32 %v522, 16
    %v622 = vor.u32 %v619, %v620
    %v623 = vsel %vm556, %v615, %v622
    %v624 = vrot.slane %v619, 4
    %v626 = vshrl.u32 %v523, 16
    %v628 = vrot.slane %v626, 7
    %v629 = vshll.u32 %v523, 16
    %v631 = vor.u32 %v628, %v629
    %v632 = vrot.slane %v628, 4
    %v634 = vshrl.u32 %v524, 16
    %v636 = vrot.slane %v634, 7
    %v637 = vshll.u32 %v524, 16
    %v639 = vor.u32 %v636, %v637
    %v640 = vsel %vm556, %v632, %v639
    %v641 = vrot.slane %v636, 4
    %v643 = vshrl.u32 %v525, 16
    %v645 = vrot.slane %v643, 7
    %v646 = vshll.u32 %v525, 16
    %v648 = vor.u32 %v645, %v646
    %v649 = vrot.slane %v645, 4
    %v651 = vshrl.u32 %v526, 16
    %v653 = vrot.slane %v651, 7
    %v654 = vshll.u32 %v526, 16
    %v656 = vor.u32 %v653, %v654
    %v657 = vsel %vm556, %v649, %v656
    %v658 = vrot.slane %v653, 4
    %v660 = vshrl.u32 %v527, 16
    %v662 = vrot.slane %v660, 7
    %v663 = vshll.u32 %v527, 16
    %v665 = vor.u32 %v662, %v663
    %v666 = vrot.slane %v662, 4
    %v668 = vshrl.u32 %v528, 16
    %v670 = vrot.slane %v668, 7
    %v671 = vshll.u32 %v528, 16
    %v673 = vor.u32 %v670, %v671
    %v674 = vsel %vm556, %v666, %v673
    %v675 = vrot.slane %v670, 4
    %v677 = vshrl.u32 %v529, 16
    %v679 = vrot.slane %v677, 7
    %v680 = vshll.u32 %v529, 16
    %v682 = vor.u32 %v679, %v680
    %v683 = vrot.slane %v679, 4
    %v685 = vshrl.u32 %v530, 16
    %v687 = vrot.slane %v685, 7
    %v688 = vshll.u32 %v530, 16
    %v690 = vor.u32 %v687, %v688
    %v691 = vsel %vm556, %v683, %v690
    %v692 = vrot.slane %v687, 4
    %v694 = vshrl.u32 %v531, 16
    %v696 = vrot.slane %v694, 7
    %v697 = vshll.u32 %v531, 16
    %v699 = vor.u32 %v696, %v697
    %v700 = vrot.slane %v696, 4
    %v702 = vshrl.u32 %v532, 16
    %v704 = vrot.slane %v702, 7
    %v705 = vshll.u32 %v532, 16
    %v707 = vor.u32 %v704, %v705
    %v708 = vsel %vm556, %v700, %v707
    %v709 = vrot.slane %v704, 4
    %v711 = vshrl.u32 %v533, 16
    %v713 = vrot.slane %v711, 7
    %v714 = vshll.u32 %v533, 16
    %v716 = vor.u32 %v713, %v714
    %v717 = vrot.slane %v713, 4
    %v719 = vshrl.u32 %v534, 16
    %v721 = vrot.slane %v719, 7
    %v722 = vshll.u32 %v534, 16
    %v724 = vor.u32 %v721, %v722
    %v725 = vsel %vm556, %v717, %v724
    %v726 = vrot.slane %v721, 4
    %v728 = vshrl.u32 %v535, 16
    %v730 = vrot.slane %v728, 7
    %v731 = vshll.u32 %v535, 16
    %v733 = vor.u32 %v730, %v731
    %v734 = vrot.slane %v730, 4
    %v736 = vshrl.u32 %v536, 16
    %v738 = vrot.slane %v736, 7
    %v739 = vshll.u32 %v536, 16
    %v741 = vor.u32 %v738, %v739
    %v742 = vsel %vm556, %v734, %v741
    %v743 = vrot.slane %v738, 4
    %v745 = vshrl.u32 %v537, 16
    %v747 = vrot.slane %v745, 7
    %v748 = vshll.u32 %v537, 16
    %v750 = vor.u32 %v747, %v748
    %v751 = vrot.slane %v747, 4
    %v753 = vshrl.u32 %v538, 16
    %v755 = vrot.slane %v753, 7
    %v756 = vshll.u32 %v538, 16
    %v758 = vor.u32 %v755, %v756
    %v759 = vsel %vm556, %v751, %v758
    %v760 = vrot.slane %v755, 4
    %v762 = vshrl.u32 %v539, 16
    %v764 = vrot.slane %v762, 7
    %v765 = vshll.u32 %v539, 16
    %v767 = vor.u32 %v764, %v765
    %v768 = vrot.slane %v764, 4
    %v770 = vshrl.u32 %v540, 16
    %v772 = vrot.slane %v770, 7
    %v773 = vshll.u32 %v540, 16
    %v775 = vor.u32 %v772, %v773
    %v776 = vsel %vm556, %v768, %v775
    %v777 = vrot.slane %v772, 4
    %v779 = vshrl.u32 %v541, 16
    %v781 = vrot.slane %v779, 7
    %v782 = vshll.u32 %v541, 16
    %v784 = vor.u32 %v781, %v782
    %v785 = vrot.slane %v781, 4
    %v787 = vshrl.u32 %v542, 16
    %v789 = vrot.slane %v787, 7
    %v790 = vshll.u32 %v542, 16
    %v792 = vor.u32 %v789, %v790
    %v793 = vsel %vm556, %v785, %v792
    %v794 = vrot.slane %v789, 4
    %v796 = vshrl.u32 %v543, 16
    %v798 = vrot.slane %v796, 7
    %v799 = vshll.u32 %v543, 16
    %v801 = vor.u32 %v798, %v799
    %v802 = vrot.slane %v798, 4
    %v804 = vshrl.u32 %v544, 16
    %v806 = vrot.slane %v804, 7
    %v807 = vshll.u32 %v544, 16
    %v809 = vor.u32 %v806, %v807
    %v810 = vsel %vm556, %v802, %v809
    %v811 = vrot.slane %v806, 4
    %v813 = vshrl.u32 %v545, 16
    %v815 = vrot.slane %v813, 7
    %v816 = vshll.u32 %v545, 16
    %v818 = vor.u32 %v815, %v816
    %v819 = vrot.slane %v815, 4
    %v821 = vshrl.u32 %v546, 16
    %v823 = vrot.slane %v821, 7
    %v824 = vshll.u32 %v546, 16
    %v826 = vor.u32 %v823, %v824
    %v827 = vsel %vm556, %v819, %v826
    %v828 = vrot.slane %v823, 4
    %v830 = vshrl.u32 %v547, 16
    %v832 = vrot.slane %v830, 7
    %v833 = vshll.u32 %v547, 16
    %v835 = vor.u32 %v832, %v833
    %v836 = vrot.slane %v832, 4
    %v838 = vshrl.u32 %v548, 16
    %v840 = vrot.slane %v838, 7
    %v841 = vshll.u32 %v548, 16
    %v843 = vor.u32 %v840, %v841
    %v844 = vsel %vm556, %v836, %v843
    %v845 = vrot.slane %v840, 4
    %v847 = vshrl.u32 %v549, 16
    %v849 = vrot.slane %v847, 7
    %v850 = vshll.u32 %v549, 16
    %v852 = vor.u32 %v849, %v850
    %v853 = vrot.slane %v849, 4
    %v855 = vshrl.u32 %v550, 16
    %v857 = vrot.slane %v855, 7
    %v858 = vshll.u32 %v550, 16
    %v860 = vor.u32 %v857, %v858
    %v861 = vsel %vm556, %v853, %v860
    %v862 = vrot.slane %v857, 4
    %v864 = vshrl.u32 %v551, 16
    %v866 = vrot.slane %v864, 7
    %v867 = vshll.u32 %v551, 16
    %v869 = vor.u32 %v866, %v867
    %v870 = vrot.slane %v866, 4
    %v872 = vshrl.u32 %v552, 16
    %v874 = vrot.slane %v872, 7
    %v875 = vshll.u32 %v552, 16
    %v877 = vor.u32 %v874, %v875
    %v878 = vsel %vm556, %v870, %v877
    %v879 = vrot.slane %v874, 4
    %v881 = vshrl.u32 %v553, 16
    %v883 = vrot.slane %v881, 7
    %v884 = vshll.u32 %v553, 16
    %v886 = vor.u32 %v883, %v884
    %v887 = vrot.slane %v883, 4
    %v889 = vshrl.u32 %v554, 16
    %v891 = vrot.slane %v889, 7
    %v892 = vshll.u32 %v554, 16
    %v894 = vor.u32 %v891, %v892
    %v895 = vsel %vm556, %v887, %v894
    %v896 = vrot.slane %v891, 4
    %vm957 = vcmask 1043456
    %vm958 = vsmask.f32 7938
    %vm959 = vmand %vm957, %vm958
    %v960 = vld [vmem:[#allocation8] sm:$0xf]
    %v961 = vsel %vm959, %v563, %v960
    %962 = vst [vmem:[#allocation8] sm:$0xf] %v961
    %963 = vst [vmem:[#allocation8 + $0x4] sm:$0xf] %v572
    %v964 = vld [vmem:[#allocation8 + $0x8] sm:$0x1]
    %v965 = vsel %vm334, %v573, %v964
    %966 = vst [vmem:[#allocation8 + $0x8] sm:$0x1] %v965
    %v967 = vld [vmem:[#allocation8 + $0x14] sm:$0xf]
    %v968 = vsel %vm959, %v580, %v967
    %969 = vst [vmem:[#allocation8 + $0x14] sm:$0xf] %v968
    %970 = vst [vmem:[#allocation8 + $0x18] sm:$0xf] %v589
    %v971 = vld [vmem:[#allocation8 + $0x1c] sm:$0x1]
    %v972 = vsel %vm334, %v590, %v971
    %973 = vst [vmem:[#allocation8 + $0x1c] sm:$0x1] %v972
    %v974 = vld [vmem:[#allocation8 + $0x28] sm:$0xf]
    %v975 = vsel %vm959, %v597, %v974
    %976 = vst [vmem:[#allocation8 + $0x28] sm:$0xf] %v975
    %977 = vst [vmem:[#allocation8 + $0x2c] sm:$0xf] %v606
    %v978 = vld [vmem:[#allocation8 + $0x30] sm:$0x1]
    %v979 = vsel %vm334, %v607, %v978
    %980 = vst [vmem:[#allocation8 + $0x30] sm:$0x1] %v979
    %v981 = vld [vmem:[#allocation8 + $0x3c] sm:$0xf]
    %v982 = vsel %vm959, %v614, %v981
    %983 = vst [vmem:[#allocation8 + $0x3c] sm:$0xf] %v982
    %984 = vst [vmem:[#allocation8 + $0x40] sm:$0xf] %v623
    %v985 = vld [vmem:[#allocation8 + $0x44] sm:$0x1]
    %v986 = vsel %vm334, %v624, %v985
    %987 = vst [vmem:[#allocation8 + $0x44] sm:$0x1] %v986
    %v988 = vld [vmem:[#allocation8 + $0x50] sm:$0xf]
    %v989 = vsel %vm959, %v631, %v988
    %990 = vst [vmem:[#allocation8 + $0x50] sm:$0xf] %v989
    %991 = vst [vmem:[#allocation8 + $0x54] sm:$0xf] %v640
    %v992 = vld [vmem:[#allocation8 + $0x58] sm:$0x1]
    %v993 = vsel %vm334, %v641, %v992
    %994 = vst [vmem:[#allocation8 + $0x58] sm:$0x1] %v993
    %v995 = vld [vmem:[#allocation8 + $0x64] sm:$0xf]
    %v996 = vsel %vm959, %v648, %v995
    %997 = vst [vmem:[#allocation8 + $0x64] sm:$0xf] %v996
    %998 = vst [vmem:[#allocation8 + $0x68] sm:$0xf] %v657
    %v999 = vld [vmem:[#allocation8 + $0x6c] sm:$0x1]
    %v1000 = vsel %vm334, %v658, %v999
    %1001 = vst [vmem:[#allocation8 + $0x6c] sm:$0x1] %v1000
    %v1002 = vld [vmem:[#allocation8 + $0x78] sm:$0xf]
    %v1003 = vsel %vm959, %v665, %v1002
    %1004 = vst [vmem:[#allocation8 + $0x78] sm:$0xf] %v1003
    %1005 = vst [vmem:[#allocation8 + $0x7c] sm:$0xf] %v674
    %v1006 = vld [vmem:[#allocation8 + $0x80] sm:$0x1]
    %v1007 = vsel %vm334, %v675, %v1006
    %1008 = vst [vmem:[#allocation8 + $0x80] sm:$0x1] %v1007
    %v1009 = vld [vmem:[#allocation8 + $0x8c] sm:$0xf]
    %v1010 = vsel %vm959, %v682, %v1009
    %1011 = vst [vmem:[#allocation8 + $0x8c] sm:$0xf] %v1010
    %1012 = vst [vmem:[#allocation8 + $0x90] sm:$0xf] %v691
    %v1013 = vld [vmem:[#allocation8 + $0x94] sm:$0x1]
    %v1014 = vsel %vm334, %v692, %v1013
    %1015 = vst [vmem:[#allocation8 + $0x94] sm:$0x1] %v1014
    %v1016 = vld [vmem:[#allocation8 + $0xa0] sm:$0xf]
    %v1017 = vsel %vm959, %v699, %v1016
    %1018 = vst [vmem:[#allocation8 + $0xa0] sm:$0xf] %v1017
    %1019 = vst [vmem:[#allocation8 + $0xa4] sm:$0xf] %v708
    %v1020 = vld [vmem:[#allocation8 + $0xa8] sm:$0x1]
    %v1021 = vsel %vm334, %v709, %v1020
    %1022 = vst [vmem:[#allocation8 + $0xa8] sm:$0x1] %v1021
    %v1023 = vld [vmem:[#allocation8 + $0xb4] sm:$0xf]
    %v1024 = vsel %vm959, %v716, %v1023
    %1025 = vst [vmem:[#allocation8 + $0xb4] sm:$0xf] %v1024
    %1026 = vst [vmem:[#allocation8 + $0xb8] sm:$0xf] %v725
    %v1027 = vld [vmem:[#allocation8 + $0xbc] sm:$0x1]
    %v1028 = vsel %vm334, %v726, %v1027
    %1029 = vst [vmem:[#allocation8 + $0xbc] sm:$0x1] %v1028
    %v1030 = vld [vmem:[#allocation8 + $0xc8] sm:$0xf]
    %v1031 = vsel %vm959, %v733, %v1030
    %1032 = vst [vmem:[#allocation8 + $0xc8] sm:$0xf] %v1031
    %1033 = vst [vmem:[#allocation8 + $0xcc] sm:$0xf] %v742
    %v1034 = vld [vmem:[#allocation8 + $0xd0] sm:$0x1]
    %v1035 = vsel %vm334, %v743, %v1034
    %1036 = vst [vmem:[#allocation8 + $0xd0] sm:$0x1] %v1035
    %v1037 = vld [vmem:[#allocation8 + $0xdc] sm:$0xf]
    %v1038 = vsel %vm959, %v750, %v1037
    %1039 = vst [vmem:[#allocation8 + $0xdc] sm:$0xf] %v1038
    %1040 = vst [vmem:[#allocation8 + $0xe0] sm:$0xf] %v759
    %v1041 = vld [vmem:[#allocation8 + $0xe4] sm:$0x1]
    %v1042 = vsel %vm334, %v760, %v1041
    %1043 = vst [vmem:[#allocation8 + $0xe4] sm:$0x1] %v1042
    %v1044 = vld [vmem:[#allocation8 + $0xf0] sm:$0xf]
    %v1045 = vsel %vm959, %v767, %v1044
    %1046 = vst [vmem:[#allocation8 + $0xf0] sm:$0xf] %v1045
    %1047 = vst [vmem:[#allocation8 + $0xf4] sm:$0xf] %v776
    %v1048 = vld [vmem:[#allocation8 + $0xf8] sm:$0x1]
    %v1049 = vsel %vm334, %v777, %v1048
    %1050 = vst [vmem:[#allocation8 + $0xf8] sm:$0x1] %v1049
    %v1051 = vld [vmem:[#allocation8 + $0x104] sm:$0xf]
    %v1052 = vsel %vm959, %v784, %v1051
    %1053 = vst [vmem:[#allocation8 + $0x104] sm:$0xf] %v1052
    %1054 = vst [vmem:[#allocation8 + $0x108] sm:$0xf] %v793
    %v1055 = vld [vmem:[#allocation8 + $0x10c] sm:$0x1]
    %v1056 = vsel %vm334, %v794, %v1055
    %1057 = vst [vmem:[#allocation8 + $0x10c] sm:$0x1] %v1056
    %v1058 = vld [vmem:[#allocation8 + $0x118] sm:$0xf]
    %v1059 = vsel %vm959, %v801, %v1058
    %1060 = vst [vmem:[#allocation8 + $0x118] sm:$0xf] %v1059
    %1061 = vst [vmem:[#allocation8 + $0x11c] sm:$0xf] %v810
    %v1062 = vld [vmem:[#allocation8 + $0x120] sm:$0x1]
    %v1063 = vsel %vm334, %v811, %v1062
    %1064 = vst [vmem:[#allocation8 + $0x120] sm:$0x1] %v1063
    %v1065 = vld [vmem:[#allocation8 + $0x12c] sm:$0xf]
    %v1066 = vsel %vm959, %v818, %v1065
    %1067 = vst [vmem:[#allocation8 + $0x12c] sm:$0xf] %v1066
    %1068 = vst [vmem:[#allocation8 + $0x130] sm:$0xf] %v827
    %v1069 = vld [vmem:[#allocation8 + $0x134] sm:$0x1]
    %v1070 = vsel %vm334, %v828, %v1069
    %1071 = vst [vmem:[#allocation8 + $0x134] sm:$0x1] %v1070
    %v1072 = vld [vmem:[#allocation8 + $0x140] sm:$0xf]
    %v1073 = vsel %vm959, %v835, %v1072
    %1074 = vst [vmem:[#allocation8 + $0x140] sm:$0xf] %v1073
    %1075 = vst [vmem:[#allocation8 + $0x144] sm:$0xf] %v844
    %v1076 = vld [vmem:[#allocation8 + $0x148] sm:$0x1]
    %v1077 = vsel %vm334, %v845, %v1076
    %1078 = vst [vmem:[#allocation8 + $0x148] sm:$0x1] %v1077
    %v1079 = vld [vmem:[#allocation8 + $0x154] sm:$0xf]
    %v1080 = vsel %vm959, %v852, %v1079
    %1081 = vst [vmem:[#allocation8 + $0x154] sm:$0xf] %v1080
    %1082 = vst [vmem:[#allocation8 + $0x158] sm:$0xf] %v861
    %v1083 = vld [vmem:[#allocation8 + $0x15c] sm:$0x1]
    %v1084 = vsel %vm334, %v862, %v1083
    %1085 = vst [vmem:[#allocation8 + $0x15c] sm:$0x1] %v1084
    %v1086 = vld [vmem:[#allocation8 + $0x168] sm:$0xf]
    %v1087 = vsel %vm959, %v869, %v1086
    %1088 = vst [vmem:[#allocation8 + $0x168] sm:$0xf] %v1087
    %1089 = vst [vmem:[#allocation8 + $0x16c] sm:$0xf] %v878
    %v1090 = vld [vmem:[#allocation8 + $0x170] sm:$0x1]
    %v1091 = vsel %vm334, %v879, %v1090
    %1092 = vst [vmem:[#allocation8 + $0x170] sm:$0x1] %v1091
    %v1093 = vld [vmem:[#allocation8 + $0x17c] sm:$0xf]
    %v1094 = vsel %vm959, %v886, %v1093
    %1095 = vst [vmem:[#allocation8 + $0x17c] sm:$0xf] %v1094
    %1096 = vst [vmem:[#allocation8 + $0x180] sm:$0xf] %v895
    %v1097 = vld [vmem:[#allocation8 + $0x184] sm:$0x1]
    %v1098 = vsel %vm334, %v896, %v1097
    %1099 = vst [vmem:[#allocation8 + $0x184] sm:$0x1] %v1098
    %v1100 = vld [vmem:[#allocation7] sm:$0xf]
    %v1101 = vld [vmem:[#allocation7 + $0x4] sm:$0xf]
    %v1102 = vld [vmem:[#allocation7 + $0x8] sm:$0xf]
    %v1103 = vld [vmem:[#allocation7 + $0xc] sm:$0xf]
    %v1104 = vld [vmem:[#allocation7 + $0x10] sm:$0xf]
    %v1105 = vld [vmem:[#allocation7 + $0x14] sm:$0xf]
    %v1106 = vld [vmem:[#allocation7 + $0x18] sm:$0xf]
    %v1107 = vld [vmem:[#allocation7 + $0x1c] sm:$0xf]
    %v1108 = vld [vmem:[#allocation7 + $0x20] sm:$0xf]
    %v1109 = vld [vmem:[#allocation7 + $0x24] sm:$0xf]
    %v1110 = vld [vmem:[#allocation7 + $0x28] sm:$0xf]
    %v1111 = vld [vmem:[#allocation7 + $0x2c] sm:$0xf]
    %v1112 = vld [vmem:[#allocation7 + $0x30] sm:$0xf]
    %v1113 = vld [vmem:[#allocation7 + $0x34] sm:$0xf]
    %v1114 = vld [vmem:[#allocation7 + $0x38] sm:$0xf]
    %v1115 = vld [vmem:[#allocation7 + $0x3c] sm:$0xf]
    %v1116 = vld [vmem:[#allocation7 + $0x40] sm:$0xf]
    %v1117 = vld [vmem:[#allocation7 + $0x44] sm:$0xf]
    %v1118 = vld [vmem:[#allocation7 + $0x48] sm:$0xf]
    %v1119 = vld [vmem:[#allocation7 + $0x4c] sm:$0xf]
    %v1120 = vld [vmem:[#allocation7 + $0x50] sm:$0xf]
    %v1121 = vld [vmem:[#allocation7 + $0x54] sm:$0xf]
    %v1122 = vld [vmem:[#allocation7 + $0x58] sm:$0xf]
    %v1123 = vld [vmem:[#allocation7 + $0x5c] sm:$0xf]
    %v1124 = vld [vmem:[#allocation7 + $0x60] sm:$0xf]
    %v1125 = vld [vmem:[#allocation7 + $0x64] sm:$0xf]
    %v1126 = vld [vmem:[#allocation7 + $0x68] sm:$0xf]
    %v1127 = vld [vmem:[#allocation7 + $0x6c] sm:$0xf]
    %v1128 = vld [vmem:[#allocation7 + $0x70] sm:$0xf]
    %v1129 = vld [vmem:[#allocation7 + $0x74] sm:$0xf]
    %v1130 = vld [vmem:[#allocation7 + $0x78] sm:$0xf]
    %v1131 = vld [vmem:[#allocation7 + $0x7c] sm:$0xf]
    %v1132 = vld [vmem:[#allocation7 + $0x80] sm:$0xf]
    %v1133 = vld [vmem:[#allocation7 + $0x84] sm:$0xf]
    %v1134 = vld [vmem:[#allocation7 + $0x88] sm:$0xf]
    %v1135 = vld [vmem:[#allocation7 + $0x8c] sm:$0xf]
    %v1136 = vld [vmem:[#allocation7 + $0x90] sm:$0xf]
    %v1137 = vld [vmem:[#allocation7 + $0x94] sm:$0xf]
    %v1138 = vld [vmem:[#allocation7 + $0x98] sm:$0xf]
    %v1139 = vld [vmem:[#allocation7 + $0x9c] sm:$0xf]
    %v1140 = vld [vmem:[#allocation7 + $0xa0] sm:$0xf]
    %v1141 = vld [vmem:[#allocation7 + $0xa4] sm:$0xf]
    %v1142 = vld [vmem:[#allocation7 + $0xa8] sm:$0xf]
    %v1143 = vld [vmem:[#allocation7 + $0xac] sm:$0xf]
    %v1144 = vld [vmem:[#allocation7 + $0xb0] sm:$0xf]
    %v1145 = vld [vmem:[#allocation7 + $0xb4] sm:$0xf]
    %v1146 = vld [vmem:[#allocation7 + $0xb8] sm:$0xf]
    %v1147 = vld [vmem:[#allocation7 + $0xbc] sm:$0xf]
    %v1148 = vld [vmem:[#allocation7 + $0xc0] sm:$0xf]
    %v1149 = vld [vmem:[#allocation7 + $0xc4] sm:$0xf]
    %v1150 = vld [vmem:[#allocation7 + $0xc8] sm:$0xf]
    %v1151 = vld [vmem:[#allocation7 + $0xcc] sm:$0xf]
    %v1152 = vld [vmem:[#allocation7 + $0xd0] sm:$0xf]
    %v1153 = vld [vmem:[#allocation7 + $0xd4] sm:$0xf]
    %v1154 = vld [vmem:[#allocation7 + $0xd8] sm:$0xf]
    %v1155 = vld [vmem:[#allocation7 + $0xdc] sm:$0xf]
    %v1156 = vld [vmem:[#allocation7 + $0xe0] sm:$0xf]
    %v1157 = vld [vmem:[#allocation7 + $0xe4] sm:$0xf]
    %v1158 = vld [vmem:[#allocation7 + $0xe8] sm:$0xf]
    %v1159 = vld [vmem:[#allocation7 + $0xec] sm:$0xf]
    %v1161 = vshrl.u32 %v1100, 16
    %v1163 = vrot.slane %v1161, 7
    %v1164 = vshll.u32 %v1100, 16
    %v1166 = vor.u32 %v1163, %v1164
    %v1167 = vrot.slane %v1163, 4
    %v1169 = vshrl.u32 %v1101, 16
    %v1171 = vrot.slane %v1169, 7
    %v1172 = vshll.u32 %v1101, 16
    %v1174 = vor.u32 %v1171, %v1172
    %v1175 = vsel %vm556, %v1167, %v1174
    %v1176 = vrot.slane %v1171, 4
    %v1178 = vshrl.u32 %v1102, 16
    %v1180 = vrot.slane %v1178, 7
    %v1181 = vshll.u32 %v1102, 16
    %v1183 = vor.u32 %v1180, %v1181
    %v1184 = vsel %vm556, %v1176, %v1183
    %v1186 = vshrl.u32 %v1103, 16
    %v1188 = vrot.slane %v1186, 7
    %v1189 = vshll.u32 %v1103, 16
    %v1191 = vor.u32 %v1188, %v1189
    %v1192 = vrot.slane %v1188, 4
    %v1194 = vshrl.u32 %v1104, 16
    %v1196 = vrot.slane %v1194, 7
    %v1197 = vshll.u32 %v1104, 16
    %v1199 = vor.u32 %v1196, %v1197
    %v1200 = vsel %vm556, %v1192, %v1199
    %v1201 = vrot.slane %v1196, 4
    %v1203 = vshrl.u32 %v1105, 16
    %v1205 = vrot.slane %v1203, 7
    %v1206 = vshll.u32 %v1105, 16
    %v1208 = vor.u32 %v1205, %v1206
    %v1209 = vsel %vm556, %v1201, %v1208
    %v1211 = vshrl.u32 %v1106, 16
    %v1213 = vrot.slane %v1211, 7
    %v1214 = vshll.u32 %v1106, 16
    %v1216 = vor.u32 %v1213, %v1214
    %v1217 = vrot.slane %v1213, 4
    %v1219 = vshrl.u32 %v1107, 16
    %v1221 = vrot.slane %v1219, 7
    %v1222 = vshll.u32 %v1107, 16
    %v1224 = vor.u32 %v1221, %v1222
    %v1225 = vsel %vm556, %v1217, %v1224
    %v1226 = vrot.slane %v1221, 4
    %v1228 = vshrl.u32 %v1108, 16
    %v1230 = vrot.slane %v1228, 7
    %v1231 = vshll.u32 %v1108, 16
    %v1233 = vor.u32 %v1230, %v1231
    %v1234 = vsel %vm556, %v1226, %v1233
    %v1236 = vshrl.u32 %v1109, 16
    %v1238 = vrot.slane %v1236, 7
    %v1239 = vshll.u32 %v1109, 16
    %v1241 = vor.u32 %v1238, %v1239
    %v1242 = vrot.slane %v1238, 4
    %v1244 = vshrl.u32 %v1110, 16
    %v1246 = vrot.slane %v1244, 7
    %v1247 = vshll.u32 %v1110, 16
    %v1249 = vor.u32 %v1246, %v1247
    %v1250 = vsel %vm556, %v1242, %v1249
    %v1251 = vrot.slane %v1246, 4
    %v1253 = vshrl.u32 %v1111, 16
    %v1255 = vrot.slane %v1253, 7
    %v1256 = vshll.u32 %v1111, 16
    %v1258 = vor.u32 %v1255, %v1256
    %v1259 = vsel %vm556, %v1251, %v1258
    %v1261 = vshrl.u32 %v1112, 16
    %v1263 = vrot.slane %v1261, 7
    %v1264 = vshll.u32 %v1112, 16
    %v1266 = vor.u32 %v1263, %v1264
    %v1267 = vrot.slane %v1263, 4
    %v1269 = vshrl.u32 %v1113, 16
    %v1271 = vrot.slane %v1269, 7
    %v1272 = vshll.u32 %v1113, 16
    %v1274 = vor.u32 %v1271, %v1272
    %v1275 = vsel %vm556, %v1267, %v1274
    %v1276 = vrot.slane %v1271, 4
    %v1278 = vshrl.u32 %v1114, 16
    %v1280 = vrot.slane %v1278, 7
    %v1281 = vshll.u32 %v1114, 16
    %v1283 = vor.u32 %v1280, %v1281
    %v1284 = vsel %vm556, %v1276, %v1283
    %v1286 = vshrl.u32 %v1115, 16
    %v1288 = vrot.slane %v1286, 7
    %v1289 = vshll.u32 %v1115, 16
    %v1291 = vor.u32 %v1288, %v1289
    %v1292 = vrot.slane %v1288, 4
    %v1294 = vshrl.u32 %v1116, 16
    %v1296 = vrot.slane %v1294, 7
    %v1297 = vshll.u32 %v1116, 16
    %v1299 = vor.u32 %v1296, %v1297
    %v1300 = vsel %vm556, %v1292, %v1299
    %v1301 = vrot.slane %v1296, 4
    %v1303 = vshrl.u32 %v1117, 16
    %v1305 = vrot.slane %v1303, 7
    %v1306 = vshll.u32 %v1117, 16
    %v1308 = vor.u32 %v1305, %v1306
    %v1309 = vsel %vm556, %v1301, %v1308
    %v1311 = vshrl.u32 %v1118, 16
    %v1313 = vrot.slane %v1311, 7
    %v1314 = vshll.u32 %v1118, 16
    %v1316 = vor.u32 %v1313, %v1314
    %v1317 = vrot.slane %v1313, 4
    %v1319 = vshrl.u32 %v1119, 16
    %v1321 = vrot.slane %v1319, 7
    %v1322 = vshll.u32 %v1119, 16
    %v1324 = vor.u32 %v1321, %v1322
    %v1325 = vsel %vm556, %v1317, %v1324
    %v1326 = vrot.slane %v1321, 4
    %v1328 = vshrl.u32 %v1120, 16
    %v1330 = vrot.slane %v1328, 7
    %v1331 = vshll.u32 %v1120, 16
    %v1333 = vor.u32 %v1330, %v1331
    %v1334 = vsel %vm556, %v1326, %v1333
    %v1336 = vshrl.u32 %v1121, 16
    %v1338 = vrot.slane %v1336, 7
    %v1339 = vshll.u32 %v1121, 16
    %v1341 = vor.u32 %v1338, %v1339
    %v1342 = vrot.slane %v1338, 4
    %v1344 = vshrl.u32 %v1122, 16
    %v1346 = vrot.slane %v1344, 7
    %v1347 = vshll.u32 %v1122, 16
    %v1349 = vor.u32 %v1346, %v1347
    %v1350 = vsel %vm556, %v1342, %v1349
    %v1351 = vrot.slane %v1346, 4
    %v1353 = vshrl.u32 %v1123, 16
    %v1355 = vrot.slane %v1353, 7
    %v1356 = vshll.u32 %v1123, 16
    %v1358 = vor.u32 %v1355, %v1356
    %v1359 = vsel %vm556, %v1351, %v1358
    %v1361 = vshrl.u32 %v1124, 16
    %v1363 = vrot.slane %v1361, 7
    %v1364 = vshll.u32 %v1124, 16
    %v1366 = vor.u32 %v1363, %v1364
    %v1367 = vrot.slane %v1363, 4
    %v1369 = vshrl.u32 %v1125, 16
    %v1371 = vrot.slane %v1369, 7
    %v1372 = vshll.u32 %v1125, 16
    %v1374 = vor.u32 %v1371, %v1372
    %v1375 = vsel %vm556, %v1367, %v1374
    %v1376 = vrot.slane %v1371, 4
    %v1378 = vshrl.u32 %v1126, 16
    %v1380 = vrot.slane %v1378, 7
    %v1381 = vshll.u32 %v1126, 16
    %v1383 = vor.u32 %v1380, %v1381
    %v1384 = vsel %vm556, %v1376, %v1383
    %v1386 = vshrl.u32 %v1127, 16
    %v1388 = vrot.slane %v1386, 7
    %v1389 = vshll.u32 %v1127, 16
    %v1391 = vor.u32 %v1388, %v1389
    %v1392 = vrot.slane %v1388, 4
    %v1394 = vshrl.u32 %v1128, 16
    %v1396 = vrot.slane %v1394, 7
    %v1397 = vshll.u32 %v1128, 16
    %v1399 = vor.u32 %v1396, %v1397
    %v1400 = vsel %vm556, %v1392, %v1399
    %v1401 = vrot.slane %v1396, 4
    %v1403 = vshrl.u32 %v1129, 16
    %v1405 = vrot.slane %v1403, 7
    %v1406 = vshll.u32 %v1129, 16
    %v1408 = vor.u32 %v1405, %v1406
    %v1409 = vsel %vm556, %v1401, %v1408
    %v1411 = vshrl.u32 %v1130, 16
    %v1413 = vrot.slane %v1411, 7
    %v1414 = vshll.u32 %v1130, 16
    %v1416 = vor.u32 %v1413, %v1414
    %v1417 = vrot.slane %v1413, 4
    %v1419 = vshrl.u32 %v1131, 16
    %v1421 = vrot.slane %v1419, 7
    %v1422 = vshll.u32 %v1131, 16
    %v1424 = vor.u32 %v1421, %v1422
    %v1425 = vsel %vm556, %v1417, %v1424
    %v1426 = vrot.slane %v1421, 4
    %v1428 = vshrl.u32 %v1132, 16
    %v1430 = vrot.slane %v1428, 7
    %v1431 = vshll.u32 %v1132, 16
    %v1433 = vor.u32 %v1430, %v1431
    %v1434 = vsel %vm556, %v1426, %v1433
    %v1436 = vshrl.u32 %v1133, 16
    %v1438 = vrot.slane %v1436, 7
    %v1439 = vshll.u32 %v1133, 16
    %v1441 = vor.u32 %v1438, %v1439
    %v1442 = vrot.slane %v1438, 4
    %v1444 = vshrl.u32 %v1134, 16
    %v1446 = vrot.slane %v1444, 7
    %v1447 = vshll.u32 %v1134, 16
    %v1449 = vor.u32 %v1446, %v1447
    %v1450 = vsel %vm556, %v1442, %v1449
    %v1451 = vrot.slane %v1446, 4
    %v1453 = vshrl.u32 %v1135, 16
    %v1455 = vrot.slane %v1453, 7
    %v1456 = vshll.u32 %v1135, 16
    %v1458 = vor.u32 %v1455, %v1456
    %v1459 = vsel %vm556, %v1451, %v1458
    %v1461 = vshrl.u32 %v1136, 16
    %v1463 = vrot.slane %v1461, 7
    %v1464 = vshll.u32 %v1136, 16
    %v1466 = vor.u32 %v1463, %v1464
    %v1467 = vrot.slane %v1463, 4
    %v1469 = vshrl.u32 %v1137, 16
    %v1471 = vrot.slane %v1469, 7
    %v1472 = vshll.u32 %v1137, 16
    %v1474 = vor.u32 %v1471, %v1472
    %v1475 = vsel %vm556, %v1467, %v1474
    %v1476 = vrot.slane %v1471, 4
    %v1478 = vshrl.u32 %v1138, 16
    %v1480 = vrot.slane %v1478, 7
    %v1481 = vshll.u32 %v1138, 16
    %v1483 = vor.u32 %v1480, %v1481
    %v1484 = vsel %vm556, %v1476, %v1483
    %v1486 = vshrl.u32 %v1139, 16
    %v1488 = vrot.slane %v1486, 7
    %v1489 = vshll.u32 %v1139, 16
    %v1491 = vor.u32 %v1488, %v1489
    %v1492 = vrot.slane %v1488, 4
    %v1494 = vshrl.u32 %v1140, 16
    %v1496 = vrot.slane %v1494, 7
    %v1497 = vshll.u32 %v1140, 16
    %v1499 = vor.u32 %v1496, %v1497
    %v1500 = vsel %vm556, %v1492, %v1499
    %v1501 = vrot.slane %v1496, 4
    %v1503 = vshrl.u32 %v1141, 16
    %v1505 = vrot.slane %v1503, 7
    %v1506 = vshll.u32 %v1141, 16
    %v1508 = vor.u32 %v1505, %v1506
    %v1509 = vsel %vm556, %v1501, %v1508
    %v1511 = vshrl.u32 %v1142, 16
    %v1513 = vrot.slane %v1511, 7
    %v1514 = vshll.u32 %v1142, 16
    %v1516 = vor.u32 %v1513, %v1514
    %v1517 = vrot.slane %v1513, 4
    %v1519 = vshrl.u32 %v1143, 16
    %v1521 = vrot.slane %v1519, 7
    %v1522 = vshll.u32 %v1143, 16
    %v1524 = vor.u32 %v1521, %v1522
    %v1525 = vsel %vm556, %v1517, %v1524
    %v1526 = vrot.slane %v1521, 4
    %v1528 = vshrl.u32 %v1144, 16
    %v1530 = vrot.slane %v1528, 7
    %v1531 = vshll.u32 %v1144, 16
    %v1533 = vor.u32 %v1530, %v1531
    %v1534 = vsel %vm556, %v1526, %v1533
    %v1536 = vshrl.u32 %v1145, 16
    %v1538 = vrot.slane %v1536, 7
    %v1539 = vshll.u32 %v1145, 16
    %v1541 = vor.u32 %v1538, %v1539
    %v1542 = vrot.slane %v1538, 4
    %v1544 = vshrl.u32 %v1146, 16
    %v1546 = vrot.slane %v1544, 7
    %v1547 = vshll.u32 %v1146, 16
    %v1549 = vor.u32 %v1546, %v1547
    %v1550 = vsel %vm556, %v1542, %v1549
    %v1551 = vrot.slane %v1546, 4
    %v1553 = vshrl.u32 %v1147, 16
    %v1555 = vrot.slane %v1553, 7
    %v1556 = vshll.u32 %v1147, 16
    %v1558 = vor.u32 %v1555, %v1556
    %v1559 = vsel %vm556, %v1551, %v1558
    %v1561 = vshrl.u32 %v1148, 16
    %v1563 = vrot.slane %v1561, 7
    %v1564 = vshll.u32 %v1148, 16
    %v1566 = vor.u32 %v1563, %v1564
    %v1567 = vrot.slane %v1563, 4
    %v1569 = vshrl.u32 %v1149, 16
    %v1571 = vrot.slane %v1569, 7
    %v1572 = vshll.u32 %v1149, 16
    %v1574 = vor.u32 %v1571, %v1572
    %v1575 = vsel %vm556, %v1567, %v1574
    %v1576 = vrot.slane %v1571, 4
    %v1578 = vshrl.u32 %v1150, 16
    %v1580 = vrot.slane %v1578, 7
    %v1581 = vshll.u32 %v1150, 16
    %v1583 = vor.u32 %v1580, %v1581
    %v1584 = vsel %vm556, %v1576, %v1583
    %v1586 = vshrl.u32 %v1151, 16
    %v1588 = vrot.slane %v1586, 7
    %v1589 = vshll.u32 %v1151, 16
    %v1591 = vor.u32 %v1588, %v1589
    %v1592 = vrot.slane %v1588, 4
    %v1594 = vshrl.u32 %v1152, 16
    %v1596 = vrot.slane %v1594, 7
    %v1597 = vshll.u32 %v1152, 16
    %v1599 = vor.u32 %v1596, %v1597
    %v1600 = vsel %vm556, %v1592, %v1599
    %v1601 = vrot.slane %v1596, 4
    %v1603 = vshrl.u32 %v1153, 16
    %v1605 = vrot.slane %v1603, 7
    %v1606 = vshll.u32 %v1153, 16
    %v1608 = vor.u32 %v1605, %v1606
    %v1609 = vsel %vm556, %v1601, %v1608
    %v1611 = vshrl.u32 %v1154, 16
    %v1613 = vrot.slane %v1611, 7
    %v1614 = vshll.u32 %v1154, 16
    %v1616 = vor.u32 %v1613, %v1614
    %v1617 = vrot.slane %v1613, 4
    %v1619 = vshrl.u32 %v1155, 16
    %v1621 = vrot.slane %v1619, 7
    %v1622 = vshll.u32 %v1155, 16
    %v1624 = vor.u32 %v1621, %v1622
    %v1625 = vsel %vm556, %v1617, %v1624
    %v1626 = vrot.slane %v1621, 4
    %v1628 = vshrl.u32 %v1156, 16
    %v1630 = vrot.slane %v1628, 7
    %v1631 = vshll.u32 %v1156, 16
    %v1633 = vor.u32 %v1630, %v1631
    %v1634 = vsel %vm556, %v1626, %v1633
    %v1636 = vshrl.u32 %v1157, 16
    %v1638 = vrot.slane %v1636, 7
    %v1639 = vshll.u32 %v1157, 16
    %v1641 = vor.u32 %v1638, %v1639
    %v1642 = vrot.slane %v1638, 4
    %v1644 = vshrl.u32 %v1158, 16
    %v1646 = vrot.slane %v1644, 7
    %v1647 = vshll.u32 %v1158, 16
    %v1649 = vor.u32 %v1646, %v1647
    %v1650 = vsel %vm556, %v1642, %v1649
    %v1651 = vrot.slane %v1646, 4
    %v1653 = vshrl.u32 %v1159, 16
    %v1655 = vrot.slane %v1653, 7
    %v1656 = vshll.u32 %v1159, 16
    %v1658 = vor.u32 %v1655, %v1656
    %v1659 = vsel %vm556, %v1651, %v1658
    %v1720 = vld [vmem:[#allocation8 + $0x8] sm:$0xf]
    %v1721 = vsel %vm959, %v1166, %v1720
    %1722 = vst [vmem:[#allocation8 + $0x8] sm:$0xf] %v1721
    %1723 = vst [vmem:[#allocation8 + $0xc] sm:$0xf] %v1175
    %1724 = vst [vmem:[#allocation8 + $0x10] sm:$0xf] %v1184
    %v1725 = vld [vmem:[#allocation8 + $0x1c] sm:$0xf]
    %v1726 = vsel %vm959, %v1191, %v1725
    %1727 = vst [vmem:[#allocation8 + $0x1c] sm:$0xf] %v1726
    %1728 = vst [vmem:[#allocation8 + $0x20] sm:$0xf] %v1200
    %1729 = vst [vmem:[#allocation8 + $0x24] sm:$0xf] %v1209
    %v1730 = vld [vmem:[#allocation8 + $0x30] sm:$0xf]
    %v1731 = vsel %vm959, %v1216, %v1730
    %1732 = vst [vmem:[#allocation8 + $0x30] sm:$0xf] %v1731
    %1733 = vst [vmem:[#allocation8 + $0x34] sm:$0xf] %v1225
    %1734 = vst [vmem:[#allocation8 + $0x38] sm:$0xf] %v1234
    %v1735 = vld [vmem:[#allocation8 + $0x44] sm:$0xf]
    %v1736 = vsel %vm959, %v1241, %v1735
    %1737 = vst [vmem:[#allocation8 + $0x44] sm:$0xf] %v1736
    %1738 = vst [vmem:[#allocation8 + $0x48] sm:$0xf] %v1250
    %1739 = vst [vmem:[#allocation8 + $0x4c] sm:$0xf] %v1259
    %v1740 = vld [vmem:[#allocation8 + $0x58] sm:$0xf]
    %v1741 = vsel %vm959, %v1266, %v1740
    %1742 = vst [vmem:[#allocation8 + $0x58] sm:$0xf] %v1741
    %1743 = vst [vmem:[#allocation8 + $0x5c] sm:$0xf] %v1275
    %1744 = vst [vmem:[#allocation8 + $0x60] sm:$0xf] %v1284
    %v1745 = vld [vmem:[#allocation8 + $0x6c] sm:$0xf]
    %v1746 = vsel %vm959, %v1291, %v1745
    %1747 = vst [vmem:[#allocation8 + $0x6c] sm:$0xf] %v1746
    %1748 = vst [vmem:[#allocation8 + $0x70] sm:$0xf] %v1300
    %1749 = vst [vmem:[#allocation8 + $0x74] sm:$0xf] %v1309
    %v1750 = vld [vmem:[#allocation8 + $0x80] sm:$0xf]
    %v1751 = vsel %vm959, %v1316, %v1750
    %1752 = vst [vmem:[#allocation8 + $0x80] sm:$0xf] %v1751
    %1753 = vst [vmem:[#allocation8 + $0x84] sm:$0xf] %v1325
    %1754 = vst [vmem:[#allocation8 + $0x88] sm:$0xf] %v1334
    %v1755 = vld [vmem:[#allocation8 + $0x94] sm:$0xf]
    %v1756 = vsel %vm959, %v1341, %v1755
    %1757 = vst [vmem:[#allocation8 + $0x94] sm:$0xf] %v1756
    %1758 = vst [vmem:[#allocation8 + $0x98] sm:$0xf] %v1350
    %1759 = vst [vmem:[#allocation8 + $0x9c] sm:$0xf] %v1359
    %v1760 = vld [vmem:[#allocation8 + $0xa8] sm:$0xf]
    %v1761 = vsel %vm959, %v1366, %v1760
    %1762 = vst [vmem:[#allocation8 + $0xa8] sm:$0xf] %v1761
    %1763 = vst [vmem:[#allocation8 + $0xac] sm:$0xf] %v1375
    %1764 = vst [vmem:[#allocation8 + $0xb0] sm:$0xf] %v1384
    %v1765 = vld [vmem:[#allocation8 + $0xbc] sm:$0xf]
    %v1766 = vsel %vm959, %v1391, %v1765
    %1767 = vst [vmem:[#allocation8 + $0xbc] sm:$0xf] %v1766
    %1768 = vst [vmem:[#allocation8 + $0xc0] sm:$0xf] %v1400
    %1769 = vst [vmem:[#allocation8 + $0xc4] sm:$0xf] %v1409
    %v1770 = vld [vmem:[#allocation8 + $0xd0] sm:$0xf]
    %v1771 = vsel %vm959, %v1416, %v1770
    %1772 = vst [vmem:[#allocation8 + $0xd0] sm:$0xf] %v1771
    %1773 = vst [vmem:[#allocation8 + $0xd4] sm:$0xf] %v1425
    %1774 = vst [vmem:[#allocation8 + $0xd8] sm:$0xf] %v1434
    %v1775 = vld [vmem:[#allocation8 + $0xe4] sm:$0xf]
    %v1776 = vsel %vm959, %v1441, %v1775
    %1777 = vst [vmem:[#allocation8 + $0xe4] sm:$0xf] %v1776
    %1778 = vst [vmem:[#allocation8 + $0xe8] sm:$0xf] %v1450
    %1779 = vst [vmem:[#allocation8 + $0xec] sm:$0xf] %v1459
    %v1780 = vld [vmem:[#allocation8 + $0xf8] sm:$0xf]
    %v1781 = vsel %vm959, %v1466, %v1780
    %1782 = vst [vmem:[#allocation8 + $0xf8] sm:$0xf] %v1781
    %1783 = vst [vmem:[#allocation8 + $0xfc] sm:$0xf] %v1475
    %1784 = vst [vmem:[#allocation8 + $0x100] sm:$0xf] %v1484
    %v1785 = vld [vmem:[#allocation8 + $0x10c] sm:$0xf]
    %v1786 = vsel %vm959, %v1491, %v1785
    %1787 = vst [vmem:[#allocation8 + $0x10c] sm:$0xf] %v1786
    %1788 = vst [vmem:[#allocation8 + $0x110] sm:$0xf] %v1500
    %1789 = vst [vmem:[#allocation8 + $0x114] sm:$0xf] %v1509
    %v1790 = vld [vmem:[#allocation8 + $0x120] sm:$0xf]
    %v1791 = vsel %vm959, %v1516, %v1790
    %1792 = vst [vmem:[#allocation8 + $0x120] sm:$0xf] %v1791
    %1793 = vst [vmem:[#allocation8 + $0x124] sm:$0xf] %v1525
    %1794 = vst [vmem:[#allocation8 + $0x128] sm:$0xf] %v1534
    %v1795 = vld [vmem:[#allocation8 + $0x134] sm:$0xf]
    %v1796 = vsel %vm959, %v1541, %v1795
    %1797 = vst [vmem:[#allocation8 + $0x134] sm:$0xf] %v1796
    %1798 = vst [vmem:[#allocation8 + $0x138] sm:$0xf] %v1550
    %1799 = vst [vmem:[#allocation8 + $0x13c] sm:$0xf] %v1559
    %v1800 = vld [vmem:[#allocation8 + $0x148] sm:$0xf]
    %v1801 = vsel %vm959, %v1566, %v1800
    %1802 = vst [vmem:[#allocation8 + $0x148] sm:$0xf] %v1801
    %1803 = vst [vmem:[#allocation8 + $0x14c] sm:$0xf] %v1575
    %1804 = vst [vmem:[#allocation8 + $0x150] sm:$0xf] %v1584
    %v1805 = vld [vmem:[#allocation8 + $0x15c] sm:$0xf]
    %v1806 = vsel %vm959, %v1591, %v1805
    %1807 = vst [vmem:[#allocation8 + $0x15c] sm:$0xf] %v1806
    %1808 = vst [vmem:[#allocation8 + $0x160] sm:$0xf] %v1600
    %1809 = vst [vmem:[#allocation8 + $0x164] sm:$0xf] %v1609
    %v1810 = vld [vmem:[#allocation8 + $0x170] sm:$0xf]
    %v1811 = vsel %vm959, %v1616, %v1810
    %1812 = vst [vmem:[#allocation8 + $0x170] sm:$0xf] %v1811
    %1813 = vst [vmem:[#allocation8 + $0x174] sm:$0xf] %v1625
    %1814 = vst [vmem:[#allocation8 + $0x178] sm:$0xf] %v1634
    %v1815 = vld [vmem:[#allocation8 + $0x184] sm:$0xf]
    %v1816 = vsel %vm959, %v1641, %v1815
    %1817 = vst [vmem:[#allocation8 + $0x184] sm:$0xf] %v1816
    %1818 = vst [vmem:[#allocation8 + $0x188] sm:$0xf] %v1650
    %1819 = vst [vmem:[#allocation8 + $0x18c] sm:$0xf] %v1659
    // Predicated region
    $region26: #{tpu_custom_call.1} parent=1 // pred_check
      _
    $region27: #{tpu_custom_call.1} parent=1 // pred_check_branch
      %1821 = sbr.rel (0) target = $region29
    $region28: #{tpu_custom_call.1} parent=1 // pred_region
      %s1823 = ssub.s32 6400, 6400
      %1824 = vsyncadd [#allocation4], %s1823
      %s1825 = sshll.u32 [#allocation8], 4
      %s1826 = int_to_ptr.vmem [resolvable:$true] %s1825
      %1831 = dma.vmem_to_hbm [thread:$0]  %s1826, 6400, %s3, [#allocation4], 64, 64, 4
    $region29: #{tpu_custom_call.1} parent=1 // pred_fallthru
      _
    // Predicated region
    $region30: #{tpu_custom_call.1} parent=1 // pred_check
      _
    $region31: #{tpu_custom_call.1} parent=1 // pred_check_branch
      %1833 = sbr.rel (0) target = $region33
    $region32: #{tpu_custom_call.1} parent=1 // pred_region
      %1834 = dma.done [#allocation4], 6400
    $region33: #{tpu_custom_call.1} parent=1 // pred_fallthru
      _
    %1835 = vsyncpa [#allocation3], 1
    %1836 = vsyncpa [#allocation6], 1
    %1837 = vsyncpa [#allocation4], 1

</llo_original>
